<compile_context>
chip_gen: v5e
topology: v5e:2x2
jax: 0.10.0
libtpu: 0.0.40
codegen_flags: <defaults>
</compile_context>

<pallas_src>
import jax
import jax.numpy as jnp
from jax.experimental import pallas as pl
from jax.experimental.pallas import tpu as pltpu


def _round_up(x, m):
    return (x + m - 1) // m * m


def _vmem_capacity_bytes():
    try:
        cap = getattr(pltpu.get_tpu_info(), "vmem_capacity_bytes", None)
        if cap:
            return int(cap)
    except Exception:
        pass
    return 64 * 1024 * 1024  # conservative default: v7x per-TensorCore VMEM


def _embedding_gather_kernel(idx_ref, emb_ref, out_ref):
    """One tile of the gather: out[t, :] = emb[idx[t], :].

    idx_ref: (TM, 1)  int32 -- flattened (batch*tokens) indices for this tile
    emb_ref: (V, TN)  float -- (slice of the) prompt embedding table
    out_ref: (TM, TN) float -- gathered prompt embeddings for this tile
    """
    idx = idx_ref[...]                                     # (TM, 1)
    emb = emb_ref[...]                                     # (V, TN)
    tm = idx.shape[0]
    v = emb.shape[0]
    # one_hot[t, j] = (idx[t] == j); matmul against the table is an exact gather.
    iota = jax.lax.broadcasted_iota(jnp.int32, (tm, v), 1)
    one_hot = (iota == idx).astype(emb.dtype)              # (TM, V)
    out_ref[...] = jnp.dot(
        one_hot, emb, preferred_element_type=jnp.float32
    ).astype(out_ref.dtype)


def prompt_embedding_forward(indices, embedding_weight, *, out_dtype=None,
                             tm=None, use_pallas=None):
    """Equivalent of PromptEmbedding.forward(indices).

    NOTE: with the one-hot formulation, out-of-range / negative indices produce
    all-zero rows rather than raising (torch.nn.Embedding would error).
    """
    b, t = indices.shape
    v, d = embedding_weight.shape
    bt = b * t

    if out_dtype is None:
        out_dtype = embedding_weight.dtype
    out_dtype = jnp.dtype(out_dtype)
    out_bytes = out_dtype.itemsize

    # Tiny outputs: a fused XLA gather beats pallas_call launch + grid overhead.
    if use_pallas is None:
        use_pallas = bt * d * out_bytes >= (256 * 1024)
    if not use_pallas:
        return jnp.take(embedding_weight, indices, axis=0).astype(out_dtype)

    emb = embedding_weight
    if out_dtype == jnp.dtype(jnp.bfloat16) and emb.dtype != out_dtype:
        # Cast once in the wrapper; a one-hot matmul of bf16 rows is still an
        # exact gather, and halves the HBM-write bytes that bound this kernel.
        emb = emb.astype(jnp.bfloat16)
    emb_bytes = jnp.dtype(emb.dtype).itemsize

    # --- tile geometry --------------------------------------------------------
    # Output-dtype sublane packing: full-vreg stores need tm % (32 // bytes) == 0.
    sublane = max(8, 32 // out_bytes)
    tn = d if d <= 2048 else 2048             # one D tile for typical token_dim
    n_d = pl.cdiv(d, tn)

    v_lanes = max(_round_up(v, 128), 128)

    def _vmem_need(tm_):
        out_dbuf = 2 * tm_ * tn * out_bytes             # double-buffered output tile
        dot_f32 = tm_ * tn * 4                          # f32 matmul result
        onehot = tm_ * v_lanes * (emb_bytes + 4)        # one-hot + iota intermediates
        emb_dbuf = 2 * v_lanes * tn * emb_bytes         # resident table tile (x2 bufs)
        idx_dbuf = 2 * tm_ * 128 * 4                    # (tm,1) idx tile, lane-padded
        return out_dbuf + dot_f32 + onehot + emb_dbuf + idx_dbuf

    vmem_cap = _vmem_capacity_bytes()
    # Target <= ~3/4 of physical VMEM minus headroom (and cap at 48 MiB: bigger
    # tiles stop paying once the ~0.35 us/step grid overhead is amortised).
    cap_target = max(8 << 20, min(vmem_cap * 3 // 4 - (8 << 20), 48 << 20))

    if tm is None:
        per_row = (2 * out_bytes + 4) * tn + v_lanes * (emb_bytes + 4) + 2 * 128 * 4
        fixed = 2 * v_lanes * tn * emb_bytes
        tm = max(sublane, (cap_target - fixed) // per_row)
        tm = min(tm, 4096)
    if n_d == 1:
        # Keep >= 2 BT tiles so both v7x TensorCores get a share of the grid.
        tm = min(tm, _round_up(pl.cdiv(bt, 2), sublane))
    tm = max(sublane, (tm // sublane) * sublane)
    tm = min(tm, _round_up(bt, sublane))
    n_bt = pl.cdiv(bt, tm)

    idx_flat = indices.reshape(bt, 1).astype(jnp.int32)

    cost = pl.CostEstimate(
        flops=2 * bt * v * d,
        transcendentals=0,
        bytes_accessed=bt * d * out_bytes + n_d * bt * 4 + v * d * emb_bytes,
    )
    vmem_limit = int(max(16 << 20,
                         min(_vmem_need(tm) + (8 << 20),
                             max(vmem_cap - (4 << 20), 16 << 20))))

    # Grid (D-tiles, BT-tiles): BT iterates fastest, so the table block index is
    # constant across the inner loop and the table stays VMEM-resident.
    out = pl.pallas_call(
        _embedding_gather_kernel,
        out_shape=jax.ShapeDtypeStruct((bt, d), out_dtype),
        grid=(n_d, n_bt),
        in_specs=[
            pl.BlockSpec((tm, 1), lambda j, i: (i, 0)),     # indices tile
            pl.BlockSpec((v, tn), lambda j, i: (0, j)),     # table (resident over i)
        ],
        out_specs=pl.BlockSpec((tm, tn), lambda j, i: (i, j)),
        compiler_params=pltpu.CompilerParams(
            dimension_semantics=("parallel", "parallel"),
            vmem_limit_bytes=vmem_limit),
        cost_estimate=cost,
    )(idx_flat, emb)

    return out.reshape(b, t, d)


if __name__ == "__main__":
    key = jax.random.PRNGKey(0)
    k_emb, k_idx, k_emb2, k_idx2, k_emb3, k_idx3 = jax.random.split(key, 6)

    # --- Config 1: module-consistent small shapes ----------------------------
    num_virtual_tokens = 8
    num_transformer_submodules = 1
    token_dim = 32
    batch = 2
    total_virtual_tokens = num_virtual_tokens * num_transformer_submodules

    # PromptTuningInit.RANDOM path: nn.Embedding default init ~ N(0, 1).
    weight = jax.random.normal(
        k_emb, (total_virtual_tokens, token_dim), dtype=jnp.float32)
    indices = jax.random.randint(
        k_idx, (batch, total_virtual_tokens), 0, total_virtual_tokens,
        dtype=jnp.int32)

    out = prompt_embedding_forward(indices, weight, use_pallas=True)
    out = jax.block_until_ready(out)
    ref = jnp.take(weight, indices, axis=0)
    assert out.shape == (batch, total_virtual_tokens, token_dim)
    assert out.dtype == jnp.float32
    assert jnp.allclose(out, ref, atol=1e-6)

    # --- Config 2: ragged BT (65 rows) and non-128 token_dim (100) -----------
    v2, d2, b2 = 13, 100, 5
    weight2 = jax.random.normal(k_emb2, (v2, d2), dtype=jnp.float32)
    indices2 = jax.random.randint(k_idx2, (b2, v2), 0, v2, dtype=jnp.int32)

    out2 = prompt_embedding_forward(indices2, weight2, use_pallas=True)
    out2 = jax.block_until_ready(out2)
    ref2 = jnp.take(weight2, indices2, axis=0)
    assert out2.shape == (b2, v2, d2)
    assert jnp.allclose(out2, ref2, atol=1e-6)

    # --- bf16 output path (halves HBM write bytes, 16-row sublane packing) ---
    out_bf16 = prompt_embedding_forward(indices2, weight2,
                                        out_dtype=jnp.bfloat16, use_pallas=True)
    out_bf16 = jax.block_until_ready(out_bf16)
    ref_bf16 = jnp.take(weight2.astype(jnp.bfloat16), indices2, axis=0)
    assert out_bf16.dtype == jnp.bfloat16
    assert jnp.allclose(out_bf16.astype(jnp.float32),
                        ref_bf16.astype(jnp.float32), atol=1e-2)

    # --- Config 3: explicit tm override, multiple lane-dense BT tiles --------
    v3, d3, b3 = 64, 256, 16
    weight3 = jax.random.normal(k_emb3, (v3, d3), dtype=jnp.float32)
    indices3 = jax.random.randint(k_idx3, (b3, v3), 0, v3, dtype=jnp.int32)

    out3 = prompt_embedding_forward(indices3, weight3, tm=128, use_pallas=True)
    out3 = jax.block_until_ready(out3)
    ref3 = jnp.take(weight3, indices3, axis=0)
    assert out3.shape == (b3, v3, d3)
    assert jnp.allclose(out3, ref3, atol=1e-6)

    print("KERNEL_OK")
</pallas_src>

<mosaic_0001>
module attributes {stable_mosaic.version = 11 : i64} {
  func.func @_embedding_gather_kernel(%arg0: i32, %arg1: i32, %arg2: memref<8x1xi32, #tpu.memory_space<vmem>>, %arg3: memref<8x32xf32, #tpu.memory_space<vmem>>, %arg4: memref<8x32xf32, #tpu.memory_space<vmem>>) attributes {dimension_semantics = [#tpu.dimension_semantics<parallel>, #tpu.dimension_semantics<parallel>], iteration_bounds = array<i64: 1, 2>, scalar_prefetch = 0 : i64, scratch_operands = 0 : i64, tpu.core_type = #tpu.core_type<tc>, window_params = [{transform_indices = @transform_0, window_bounds = array<i64: 8, 1>}, {transform_indices = @transform_1, window_bounds = array<i64: 8, 32>}, {transform_indices = @transform_2, window_bounds = array<i64: 8, 32>}]} {
    %c0 = arith.constant 0 : index
    %c0_0 = arith.constant 0 : index
    %0 = vector.load %arg2[%c0, %c0_0] : memref<8x1xi32, #tpu.memory_space<vmem>>, vector<8x1xi32>
    %c0_1 = arith.constant 0 : index
    %c0_2 = arith.constant 0 : index
    %1 = vector.load %arg3[%c0_1, %c0_2] : memref<8x32xf32, #tpu.memory_space<vmem>>, vector<8x32xf32>
    %2 = tpu.iota {dimensions = array<i32: 1>} : vector<8x8xi32>
    %3 = vector.broadcast %0 : vector<8x1xi32> to vector<8x8xi32>
    %4 = arith.cmpi eq, %2, %3 : vector<8x8xi32>
    %5 = arith.extui %4 : vector<8x8xi1> to vector<8x8xi32>
    %6 = arith.sitofp %5 : vector<8x8xi32> to vector<8x8xf32>
    %cst = arith.constant dense<0.000000e+00> : vector<8x32xf32>
    %7 = tpu.matmul %6, %1, %cst {dimension_numbers = #tpu.dot_dimension_numbers<[1], [0], [0], [1], [0, 0, 1, 1], [], []>} : vector<8x8xf32>, vector<8x32xf32>, vector<8x32xf32> -> vector<8x32xf32>
    %c0_3 = arith.constant 0 : index
    %c0_4 = arith.constant 0 : index
    %8 = vector.load %arg4[%c0_3, %c0_4] : memref<8x32xf32, #tpu.memory_space<vmem>>, vector<8x32xf32>
    tpu.vector_store %arg4[%c0_3, %c0_4], %7 {strides = array<i32>} : memref<8x32xf32, #tpu.memory_space<vmem>>, vector<8x32xf32>,
    return
  }
  func.func @transform_0(%arg0: i32, %arg1: i32) -> (i32, i32) {
    %c0_i32 = arith.constant 0 : i32
    %c0_i32_0 = arith.constant 0 : i32
    return %arg1, %c0_i32 : i32, i32
  }
  func.func @transform_1(%arg0: i32, %arg1: i32) -> (i32, i32) {
    %c0_i32 = arith.constant 0 : i32
    %c0_i32_0 = arith.constant 0 : i32
    return %c0_i32, %arg0 : i32, i32
  }
  func.func @transform_2(%arg0: i32, %arg1: i32) -> (i32, i32) {
    %c0_i32 = arith.constant 0 : i32
    return %arg1, %arg0 : i32, i32
  }
}

</mosaic_0001>

<llo_original>
// kernel: tpu_custom_call.1
$region0: #{tpu_custom_call.1}
  #allocation0 [shape = 'u32[]', space=smem, size = 0x4, offset = 0x4, fixed_abs, tag = 'smem constant byte address 0x4 - core index']
  #allocation1 [shape = 'u32[72,128]{1,0:T(1,128)}', space=vmem, size = 0x9000, scoped, tag = 'internal scratch']
  %s0 = inlined_call_operand.vmem [shape: s32[16,1], index: 0, kind: input, shape index: {}]
  %s1 = inlined_call_operand.vmem [shape: f32[8,32], index: 1, kind: input, shape index: {}]
  %s2 = inlined_call_operand.hbm [shape: f32[16,32], index: 2, kind: output, shape index: {}]
  %s3 = sld [smem:[#allocation0]]
  $region41: #{tpu_custom_call.1} parent=0
    _
  %s5 = ssub.s32 1, %s3
  %s6 = scalar_select 0, %s5, %s3
  $region1: #{tpu_custom_call.1} parent=0
    #allocation2 [shape = 'u8[8192]{0}', space=vmem, size = 0x2000, scoped, tag = 'output window, operand 0']
    #allocation3 [shape = 's32[2]{0}', space=sflag, size = 0x8, scoped, tag = 'scoped memory for tpu_custom_call.1']
    %7 = vsyncpa [#allocation3], 0
    %s8 = scalar_lea.sflag [#allocation3], 1
    %9 = vsyncpa %s8, 0
    loop: start=0, step=1, limit=4
    $region2: #{tpu_custom_call.1} parent=1 // loop_pre_header
      _
    $region3: #{tpu_custom_call.1} parent=1 // loop_header
      %s11 = sphi 0, %s15
      %p12 = scmp.ge.s32.totalorder %s11, 4
      %s18 = sphi 0, %s30
      %s19 = sphi 0, %s26
      %s20 = sphi 0, %s18
      %s21 = sphi 0, %s19
      %s22 = sphi 0, %s20
      %s23 = sphi 0, %s21
      %s33 = sphi 0, %s35
      %s36 = sphi 0, %s33
      %s37 = sphi 0, %s36
      %s53 = sphi 0, %s37
      %s59 = sphi 0, %s61
      %s62 = sphi 0, %s59
      %s63 = sphi 0, %s62
      %s79 = sphi 0, %s63
      %s87 = sphi 0, %s89
      %s90 = sphi 0, %s87
      %s91 = sphi 0, %s90
      %s107 = sphi 0, %s91
    $region4: #{tpu_custom_call.1} parent=1 // loop_header_branch
      %14 = sbr.rel (%p12) target = $region8
    $region5: #{tpu_custom_call.1} parent=1 // loop_body
      %s16 = ssub.s32 %s11, 1
      %s17 = ssub.s32 %s11, 2
      %s24 = sadd.s32 1, %s19
      %p25 = scmp.ge.s32.totalorder %s24, 2
      %s26 = scalar_select %p25, 0, %s24
      %s27 = sadd.s32 1, %s18
      %s28 = scalar_select %p25, %s27, %s18
      %p29 = scmp.ge.s32.totalorder %s28, 1
      %s30 = scalar_select %p29, 0, %s28
      %s31 = ssub.s32 %s19, %s26
      %p32 = scmp.eq.s32.totalorder %s31, 0
      %s34 = sadd.s32 %s33, 1
      %s35 = scalar_select %p32, %s33, %s34
      %p38 = pneg %p32
      %p39 = scmp.eq.s32.totalorder %s11, 1
      %p40 = por %p38, %p39
      %p41 = scmp.ne.s32.totalorder %s33, %s36
      %p42 = scmp.eq.s32.totalorder %s11, 0
      %p43 = por %p41, %p42
      %p44 = scmp.ne.s32.totalorder %s33, %s36
      %p45 = scmp.eq.s32.totalorder %s16, 1
      %p46 = por %p44, %p45
      %p47 = scmp.ne.s32.totalorder %s36, %s37
      %p48 = scmp.eq.s32.totalorder %s16, 0
      %p49 = por %p47, %p48
      %p50 = scmp.ne.s32.totalorder %s36, %s37
      %p51 = scmp.eq.s32.totalorder %s17, 1
      %p52 = por %p50, %p51
      %p54 = scmp.ne.s32.totalorder %s37, %s53
      %p55 = scmp.eq.s32.totalorder %s17, 0
      %p56 = por %p54, %p55
      %s57 = ssub.s32 %s18, %s30
      %p58 = scmp.eq.s32.totalorder %s57, 0
      %s60 = sadd.s32 %s59, 1
      %s61 = scalar_select %p58, %s59, %s60
      %p64 = pneg %p58
      %p65 = scmp.eq.s32.totalorder %s11, 1
      %p66 = por %p64, %p65
      %p67 = scmp.ne.s32.totalorder %s59, %s62
      %p68 = scmp.eq.s32.totalorder %s11, 0
      %p69 = por %p67, %p68
      %p70 = scmp.ne.s32.totalorder %s59, %s62
      %p71 = scmp.eq.s32.totalorder %s16, 1
      %p72 = por %p70, %p71
      %p73 = scmp.ne.s32.totalorder %s62, %s63
      %p74 = scmp.eq.s32.totalorder %s16, 0
      %p75 = por %p73, %p74
      %p76 = scmp.ne.s32.totalorder %s62, %s63
      %p77 = scmp.eq.s32.totalorder %s17, 1
      %p78 = por %p76, %p77
      %p80 = scmp.ne.s32.totalorder %s63, %s79
      %p81 = scmp.eq.s32.totalorder %s17, 0
      %p82 = por %p80, %p81
      %s83 = ssub.s32 %s19, %s26
      %s84 = ssub.s32 %s18, %s30
      %s85 = sor.u32 %s83, %s84
      %p86 = scmp.eq.s32.totalorder %s85, 0
      %s88 = sadd.s32 %s87, 1
      %s89 = scalar_select %p86, %s87, %s88
      %p92 = pneg %p86
      %p93 = scmp.eq.s32.totalorder %s11, 1
      %p94 = por %p92, %p93
      %p95 = scmp.ne.s32.totalorder %s87, %s90
      %p96 = scmp.eq.s32.totalorder %s11, 0
      %p97 = por %p95, %p96
      %p98 = scmp.ne.s32.totalorder %s87, %s90
      %p99 = scmp.eq.s32.totalorder %s16, 1
      %p100 = por %p98, %p99
      %p101 = scmp.ne.s32.totalorder %s90, %s91
      %p102 = scmp.eq.s32.totalorder %s16, 0
      %p103 = por %p101, %p102
      %p104 = scmp.ne.s32.totalorder %s90, %s91
      %p105 = scmp.eq.s32.totalorder %s17, 1
      %p106 = por %p104, %p105
      %p108 = scmp.ne.s32.totalorder %s91, %s107
      %p109 = scmp.eq.s32.totalorder %s17, 0
      %p110 = por %p108, %p109
      %p111 = scmp.le.s32.totalorder 1, %s11
      %p112 = scmp.lt.s32.totalorder %s11, 3
      %p113 = pnand %p111, %p112
      %p114 = pneg %p113
      // Predicated region
      $region9: #{tpu_custom_call.1} parent=5 // pred_check
        _
      $region10: #{tpu_custom_call.1} parent=5 // pred_check_branch
        %116 = sbr.rel (%p113) target = $region12
      $region11: #{tpu_custom_call.1} parent=5 // pred_region
        %s117 = ssub.s32 %s11, 1
        // Predicated region
        $region13: #{tpu_custom_call.1} parent=11 // pred_check
          %p118 = pneg %p75
        $region14: #{tpu_custom_call.1} parent=11 // pred_check_branch
          %120 = sbr.rel (%p118) target = $region16
        $region15: #{tpu_custom_call.1} parent=11 // pred_region
          %p121 = scmp.lt.s32.totalorder %s20, 0
          %s122 = scalar_select %p121, %s20, 0
          %s123 = smul.addr %s122, 8
          %s124 = scalar_lea.vmem %s1, %s123
        $region16: #{tpu_custom_call.1} parent=11 // pred_fallthru
          _
      $region12: #{tpu_custom_call.1} parent=5 // pred_fallthru
        _
      %p125 = scmp.lt.s32.totalorder %s11, 2
      // Predicated region
      $region17: #{tpu_custom_call.1} parent=5 // pred_check
        %p126 = pneg %p125
      $region18: #{tpu_custom_call.1} parent=5 // pred_check_branch
        %128 = sbr.rel (%p126) target = $region20
      $region19: #{tpu_custom_call.1} parent=5 // pred_region
        // Predicated region
        $region21: #{tpu_custom_call.1} parent=19 // pred_check
          %p129 = pneg %p43
        $region22: #{tpu_custom_call.1} parent=19 // pred_check_branch
          %131 = sbr.rel (%p129) target = $region24
        $region23: #{tpu_custom_call.1} parent=19 // pred_region
          %p132 = scmp.lt.s32.totalorder %s19, 1
          %s133 = scalar_select %p132, %s19, 1
          %s134 = smul.addr %s133, 8
          %s135 = scalar_lea.vmem %s0, %s134
        $region24: #{tpu_custom_call.1} parent=19 // pred_fallthru
          _
      $region20: #{tpu_custom_call.1} parent=5 // pred_fallthru
        _
      %p136 = scmp.le.s32.totalorder 1, %s11
      %p137 = scmp.lt.s32.totalorder %s11, 3
      %p138 = pnand %p136, %p137
      %p139 = pneg %p138
      // Predicated region
      $region25: #{tpu_custom_call.1} parent=5 // pred_check
        _
      $region26: #{tpu_custom_call.1} parent=5 // pred_check_branch
        %141 = sbr.rel (%p138) target = $region28
      $region27: #{tpu_custom_call.1} parent=5 // pred_region
        %s142 = ssub.s32 %s11, 1
        %p143 = scmp.lt.s32.totalorder %s21, 1
        %s144 = scalar_select %p143, %s21, 1
        %s145 = smul.addr %s144, 8
        %s146 = scalar_lea.vmem %s0, %s145
        %p147 = pneg %p49
        %p148 = pneg %p46
        %p149 = scmp.lt.s32.totalorder %s20, 0
        %s150 = scalar_select %p149, %s20, 0
        %s151 = smul.addr %s150, 8
        %s152 = scalar_lea.vmem %s1, %s151
        %p153 = pneg %p75
        %p154 = pneg %p72
        %p155 = pneg %p103
        %p156 = pneg %p100
        %s157 = sand.u32 %s90, 1
        %s158 = scalar_lea.sflag [#allocation3], %s157
        %s159 = sand.u32 %s90, 1
        %s160 = smul.addr %s159, 8
        %s161 = scalar_lea.vmem [#allocation2], %s160
        %p162 = scmp.lt.s32.totalorder %s21, 1
        %s163 = scalar_select %p162, %s21, 1
        %s164 = smul.addr %s163, 8
        %s165 = scalar_lea.vmem %s0, %s164
        %p166 = scmp.lt.s32.totalorder %s20, 0
        %s167 = scalar_select %p166, %s20, 0
        %s168 = smul.addr %s167, 8
        %s169 = scalar_lea.vmem %s1, %s168
        %v170 = vld [vmem:[%s165] sm:$0xff]
        %v171 = vld [vmem:[%s169] sm:$0xff]
        %v172 = vlaneseq
        %v173 = vand.u32 %v172, 127
        %174 = vset.pattern.permute.xlu0 0
        %175 = vperm.xlu0 %174, %v170
        %v176 = vpop.permute.xlu0 %175
        %vm177 = vcmp.eq.s32.totalorder %v173, %v176
        %v178 = vsel %vm177, 1, 0
        %v179 = vcvt.s32.f32 %v178
        %vm180 = vcmask 64512
        %v182 = vsel %vm180, %v179, 0
        %184 = vmatpush.msra.mxu0 0.0
        %185 = vmatpush.msra.mxu0 0.0
        %186 = vmatpush.msra.mxu0 0.0
        %187 = vmatpush.msra.mxu0 0.0
        %188 = vmatpush.msra.mxu0 0.0
        %189 = vmatpush.msra.mxu0 0.0
        %190 = vmatpush.msra.mxu0 0.0
        %191 = vmatpush.msra.mxu0 0.0
        %192 = vmatpush.msra.mxu0 0.0
        %193 = vmatpush.msra.mxu0 0.0
        %194 = vmatpush.msra.mxu0 0.0
        %195 = vmatpush.msra.mxu0 0.0
        %196 = vmatpush.msra.mxu0 0.0
        %197 = vmatpush.msra.mxu0 0.0
        %198 = vmatpush.msra.mxu0 0.0
        %199 = vmatpush.msra.mxu0 %v171
        %200 = vmatmul.f32.gmra.mxu0 %v182
        %v201 = vpop.f32.mrf.mxu0
        %v202 = vadd.f32 0.0, %v201
        %203 = vdwg.mxu0
        %vm204 = vcmask 261120
        %205 = vst.msk [vmem:[%s161] sm:$0xff] %vm204, %v202
        %s206 = sand.u32 %s90, 1
        %s207 = scalar_lea.sflag [#allocation3], %s206
        %s208 = sand.u32 %s90, 1
        %s209 = smul.addr %s208, 8
        %s210 = scalar_lea.vmem [#allocation2], %s209
        // Predicated region
        $region29: #{tpu_custom_call.1} parent=27 // pred_check
          %p211 = pneg %p100
        $region30: #{tpu_custom_call.1} parent=27 // pred_check_branch
          %213 = sbr.rel (%p211) target = $region32
        $region31: #{tpu_custom_call.1} parent=27 // pred_region
          %215 = vsyncadd %s207, 0
          %s216 = sadd.s32 %s20, %s21
          %s217 = smul.addr %s216, 8
          %s218 = scalar_lea.hbm %s2, %s217
          %s220 = sshll.u32 %s210, 4
          %s221 = int_to_ptr.vmem [resolvable:$true] %s220
          %s222 = sshll.u32 %s218, 4
          %s223 = int_to_ptr.hbm [resolvable:$true] %s222
          %225 = dma.vmem_to_hbm [thread:$0]  %s221, 128, %s223, %s207
        $region32: #{tpu_custom_call.1} parent=27 // pred_fallthru
          _
      $region28: #{tpu_custom_call.1} parent=5 // pred_fallthru
        _
      %p226 = scmp.le.s32.totalorder 2, %s11
      // Predicated region
      $region33: #{tpu_custom_call.1} parent=5 // pred_check
        %p227 = pneg %p226
      $region34: #{tpu_custom_call.1} parent=5 // pred_check_branch
        %229 = sbr.rel (%p227) target = $region36
      $region35: #{tpu_custom_call.1} parent=5 // pred_region
        %s230 = ssub.s32 %s11, 2
        // Predicated region
        $region37: #{tpu_custom_call.1} parent=35 // pred_check
          %p231 = pneg %p106
        $region38: #{tpu_custom_call.1} parent=35 // pred_check_branch
          %233 = sbr.rel (%p231) target = $region40
        $region39: #{tpu_custom_call.1} parent=35 // pred_region
          %s234 = sand.u32 %s91, 1
          %s235 = scalar_lea.sflag [#allocation3], %s234
          %s236 = sand.u32 %s91, 1
          %s237 = smul.addr %s236, 8
          %s238 = scalar_lea.vmem [#allocation2], %s237
          %240 = dma.done %s235, 128
        $region40: #{tpu_custom_call.1} parent=35 // pred_fallthru
          _
      $region36: #{tpu_custom_call.1} parent=5 // pred_fallthru
        _
    $region6: #{tpu_custom_call.1} parent=1 // loop_footer
      %s15 = sadd.s32 1, %s11
    $region7: #{tpu_custom_call.1} parent=1 // loop_footer_branch
      %10 = sbr.rel target = $region3
    $region8: #{tpu_custom_call.1} parent=1 // loop_exit
      _
    %241 = vsyncpa [#allocation3], 1
    %s242 = scalar_lea.sflag [#allocation3], 1
    %243 = vsyncpa %s242, 1

</llo_original>
